<compile_context>
chip_gen: v7x
topology: tpu7x:2x2x1
jax: 0.10.0
libtpu: 0.0.40
codegen_flags: <defaults>
</compile_context>

<pallas_src>
import functools

import jax
import jax.numpy as jnp
from jax.experimental import pallas as pl
from jax.experimental.pallas import tpu as pltpu


def _round_up(x, n):
    return ((x + n - 1) // n) * n


def _vq_argmin_kernel(z_ref, e_ref, esq_ref, idx_ref, *, use_mxu):
    # z_ref   : (D_pad, TM)    z tile, rows along lanes
    # e_ref   : (K_pad, D_pad) codebook, resident across grid steps
    # esq_ref : (K_pad, 1)     precomputed ||e_k||^2 (f32); padded codes = 1e30
    # idx_ref : (1, TM)        int32 argmin index per row (lane-dense)
    esq = esq_ref[...]                                            # (K_pad, 1) f32

    if use_mxu:
        # bf16 operands -> f32 accumulation on the MXU.
        cross = jnp.dot(e_ref[...], z_ref[...],
                        preferred_element_type=jnp.float32)       # (K_pad, TM)
    else:
        # Tiny D: skip the MXU entirely; unrolled broadcast-multiplies on the VPU.
        e = e_ref[...].astype(jnp.float32)                        # (K_pad, D)
        z = z_ref[...].astype(jnp.float32)                        # (D, TM)
        cross = e[:, 0:1] * z[0:1, :]                             # (K_pad, TM)
        for j in range(1, e.shape[1]):
            cross = cross + e[:, j:j + 1] * z[j:j + 1, :]

    # ||z||^2 term dropped: a per-row constant cannot change the argmin over k.
    dists = esq - 2.0 * cross                                     # (K_pad, TM)

    k_pad = dists.shape[0]
    min_d = jnp.min(dists, axis=0, keepdims=True)                 # (1, TM)
    kid = jax.lax.broadcasted_iota(jnp.int32, dists.shape, 0)     # (K_pad, TM)
    idx = jnp.min(jnp.where(dists == min_d, kid, k_pad),
                  axis=0, keepdims=True)                          # (1, TM), first hit
    idx_ref[...] = idx.astype(jnp.int32)


def vector_quantizer_forward(z_e, embedding_weight, *, tm=512):
    """Pallas equivalent of VectorQuantizer.forward: returns argmin indices.

    z_e:               (..., latent_dim) float array
    embedding_weight:  (num_embeddings, latent_dim) codebook
    returns:           (...) int32 indices
    """
    lead_shape = z_e.shape[:-1]
    d = z_e.shape[-1]
    k = embedding_weight.shape[0]

    z_flat = z_e.reshape(-1, d)
    m = z_flat.shape[0]

    # Row tile: multiple of 128 (lane-dense output), large to amortize per-step
    # overhead, clamped so tiny problems stay a single grid step.
    tm = max(128, (int(tm) // 128) * 128)
    tm = min(tm, _round_up(m, 128))
    m_pad = _round_up(m, tm)

    k_pad = _round_up(k, 128)

    use_mxu = d >= 8
    if use_mxu:
        d_pad = _round_up(d, 8)
        cdt = jnp.bfloat16  # 2x MXU throughput + half the z DMA; rare near-tie flips
    else:
        d_pad = d
        cdt = jnp.float32

    # z presented as (D_pad, M_pad): wrapper-side layout plumbing (XLA transpose).
    z_dm = jnp.pad(z_flat.astype(cdt).T, ((0, d_pad - d), (0, m_pad - m)))

    # Codebook stays row-major (K, D); pad K (lane mult) and D with zeros.
    e_kd = jnp.pad(embedding_weight.astype(cdt),
                   ((0, k_pad - k), (0, d_pad - d)))

    # ||e||^2 precomputed once, f32; padded codes get a huge distance.
    e_sq = jnp.sum(embedding_weight.astype(jnp.float32) ** 2, axis=1)
    e_sq = jnp.full((k_pad,), 1e30, dtype=jnp.float32).at[:k].set(e_sq)
    e_sq = e_sq.reshape(k_pad, 1)

    grid = (m_pad // tm,)

    cost = pl.CostEstimate(
        flops=2 * m_pad * k_pad * d_pad,
        transcendentals=0,
        bytes_accessed=(z_dm.size * z_dm.dtype.itemsize
                        + e_kd.size * e_kd.dtype.itemsize
                        + e_sq.size * 4
                        + m_pad * 4),
    )

    idx = pl.pallas_call(
        functools.partial(_vq_argmin_kernel, use_mxu=use_mxu),
        out_shape=jax.ShapeDtypeStruct((1, m_pad), jnp.int32),
        grid_spec=pltpu.PrefetchScalarGridSpec(
            num_scalar_prefetch=0,
            grid=grid,
            in_specs=[
                pl.BlockSpec((d_pad, tm), lambda i: (0, i)),      # z row tile
                pl.BlockSpec((k_pad, d_pad), lambda i: (0, 0)),   # codebook (resident)
                pl.BlockSpec((k_pad, 1), lambda i: (0, 0)),       # ||e||^2 (resident)
            ],
            out_specs=pl.BlockSpec((1, tm), lambda i: (0, i)),    # lane-dense indices
        ),
        compiler_params=pltpu.CompilerParams(
            dimension_semantics=("parallel",)),
        cost_estimate=cost,
    )(z_dm, e_kd, e_sq)

    return idx[0, :m].reshape(lead_shape)


def make_embedding(num_embeddings, latent_dim, key):
    # matches nn.Embedding(...).weight.data.uniform_(-1/K, 1/K)
    return jax.random.uniform(
        key, (num_embeddings, latent_dim),
        minval=-1.0 / num_embeddings, maxval=1.0 / num_embeddings,
        dtype=jnp.float32)


if __name__ == "__main__":
    num_embeddings = 30
    latent_dim = 1

    key = jax.random.PRNGKey(0)
    k_emb, k_z = jax.random.split(key)

    embedding_weight = make_embedding(num_embeddings, latent_dim, k_emb)

    # z_e like an encoder output: (batch=2, seq=8, latent_dim=1)
    z_e = jax.random.normal(k_z, (2, 8, latent_dim), dtype=jnp.float32) * 0.05

    indices = vector_quantizer_forward(z_e, embedding_weight)
    indices = jax.block_until_ready(indices)

    # sanity check vs. plain-JAX reference of the PyTorch formula
    dists_ref = (jnp.sum(z_e ** 2, axis=-1, keepdims=True)
                 + jnp.sum(embedding_weight ** 2, axis=1)
                 - 2.0 * jnp.matmul(z_e, embedding_weight.T))
    idx_ref = jnp.argmin(dists_ref, axis=-1).astype(jnp.int32)
    assert indices.shape == z_e.shape[:-1]
    assert bool(jnp.all(indices == idx_ref))

    print("KERNEL_OK")
</pallas_src>

<mosaic_0001>
module attributes {stable_mosaic.version = 11 : i64} {
  func.func @_vq_argmin_kernel(%arg0: i32, %arg1: memref<1x128xf32, #tpu.memory_space<vmem>>, %arg2: memref<128x1xf32, #tpu.memory_space<vmem>>, %arg3: memref<128x1xf32, #tpu.memory_space<vmem>>, %arg4: memref<1x128xi32, #tpu.memory_space<vmem>>) attributes {dimension_semantics = [#tpu.dimension_semantics<parallel>], iteration_bounds = array<i64: 1>, scalar_prefetch = 0 : i64, scratch_operands = 0 : i64, tpu.core_type = #tpu.core_type<tc>, window_params = [{transform_indices = @transform_0, window_bounds = array<i64: 1, 128>}, {pipeline_mode = #tpu.pipeline_mode<synchronous>, transform_indices = @transform_1, window_bounds = array<i64: 128, 1>}, {pipeline_mode = #tpu.pipeline_mode<synchronous>, transform_indices = @transform_2, window_bounds = array<i64: 128, 1>}, {transform_indices = @transform_3, window_bounds = array<i64: 1, 128>}]} {
    %c0 = arith.constant 0 : index
    %c0_0 = arith.constant 0 : index
    %0 = vector.load %arg3[%c0, %c0_0] : memref<128x1xf32, #tpu.memory_space<vmem>>, vector<128x1xf32>
    %c0_1 = arith.constant 0 : index
    %c0_2 = arith.constant 0 : index
    %1 = vector.load %arg2[%c0_1, %c0_2] : memref<128x1xf32, #tpu.memory_space<vmem>>, vector<128x1xf32>
    %c0_3 = arith.constant 0 : index
    %c0_4 = arith.constant 0 : index
    %2 = vector.load %arg1[%c0_3, %c0_4] : memref<1x128xf32, #tpu.memory_space<vmem>>, vector<1x128xf32>
    %3 = vector.broadcast %1 : vector<128x1xf32> to vector<128x128xf32>
    %4 = vector.broadcast %2 : vector<1x128xf32> to vector<128x128xf32>
    %5 = arith.mulf %3, %4 : vector<128x128xf32>
    %cst = arith.constant 2.000000e+00 : f32
    %6 = vector.broadcast %cst : f32 to vector<128x128xf32>
    %7 = arith.mulf %6, %5 : vector<128x128xf32>
    %8 = vector.broadcast %0 : vector<128x1xf32> to vector<128x128xf32>
    %9 = arith.subf %8, %7 : vector<128x128xf32>
    %cst_5 = arith.constant dense<0x7F800000> : vector<128xf32>
    %10 = vector.multi_reduction <minimumf>, %9, %cst_5 [0] : vector<128x128xf32> to vector<128xf32>
    %11 = vector.shape_cast %10 : vector<128xf32> to vector<1x128xf32>
    %12 = tpu.iota {dimensions = array<i32: 0>} : vector<128x128xi32>
    %13 = vector.broadcast %11 : vector<1x128xf32> to vector<128x128xf32>
    %14 = arith.cmpf oeq, %9, %13 : vector<128x128xf32>
    %c128_i32 = arith.constant 128 : i32
    %15 = vector.broadcast %c128_i32 : i32 to vector<128x128xi32>
    %16 = arith.select %14, %12, %15 : vector<128x128xi1>, vector<128x128xi32>
    %cst_6 = arith.constant dense<2147483647> : vector<128xi32>
    %17 = vector.multi_reduction <minsi>, %16, %cst_6 [0] : vector<128x128xi32> to vector<128xi32>
    %18 = vector.shape_cast %17 : vector<128xi32> to vector<1x128xi32>
    %c0_7 = arith.constant 0 : index
    %c0_8 = arith.constant 0 : index
    %19 = vector.load %arg4[%c0_7, %c0_8] : memref<1x128xi32, #tpu.memory_space<vmem>>, vector<1x128xi32>
    tpu.vector_store %arg4[%c0_7, %c0_8], %18 {strides = array<i32>} : memref<1x128xi32, #tpu.memory_space<vmem>>, vector<1x128xi32>,
    return
  }
  func.func @transform_0(%arg0: i32) -> (i32, i32) {
    %c0_i32 = arith.constant 0 : i32
    %c0_i32_0 = arith.constant 0 : i32
    return %c0_i32, %arg0 : i32, i32
  }
  func.func @transform_1(%arg0: i32) -> (i32, i32) {
    %c0_i32 = arith.constant 0 : i32
    %c0_i32_0 = arith.constant 0 : i32
    %c0_i32_1 = arith.constant 0 : i32
    return %c0_i32, %c0_i32_0 : i32, i32
  }
  func.func @transform_2(%arg0: i32) -> (i32, i32) {
    %c0_i32 = arith.constant 0 : i32
    %c0_i32_0 = arith.constant 0 : i32
    %c0_i32_1 = arith.constant 0 : i32
    return %c0_i32, %c0_i32_0 : i32, i32
  }
  func.func @transform_3(%arg0: i32) -> (i32, i32) {
    %c0_i32 = arith.constant 0 : i32
    %c0_i32_0 = arith.constant 0 : i32
    return %c0_i32, %arg0 : i32, i32
  }
}

</mosaic_0001>

<llo_original>
// kernel: tpu_custom_call.1
$region0: #{tpu_custom_call.1}
  #allocation0 [shape = 'u32[]', space=smem, size = 0x4, offset = 0x4, fixed_abs, tag = 'smem constant byte address 0x4 - core index']
  #allocation1 [shape = 'u32[144,128]{1,0:T(1,128)}', space=vmem, size = 0x12000, scoped, tag = 'internal scratch']
  %s0 = inlined_call_operand.vmem [shape: f32[1,128], index: 0, kind: input, shape index: {}]
  %s1 = inlined_call_operand.vmem [shape: f32[128,1], index: 1, kind: input, shape index: {}]
  %s2 = inlined_call_operand.vmem [shape: f32[128,1], index: 2, kind: input, shape index: {}]
  %s3 = inlined_call_operand.hbm [shape: s32[1,128], index: 3, kind: output, shape index: {}]
  %s4 = sld [smem:[#allocation0]]
  $region22: #{tpu_custom_call.1} parent=0
    _
  %s6 = ssub.s32 1, %s4
  %s7 = scalar_select 0, %s6, %s4
  $region1: #{tpu_custom_call.1} parent=0
    #allocation2 [shape = 'u8[512]{0}', space=vmem, size = 0x400, scoped, tag = 'output window, operand 0, single buffered']
    #allocation3 [shape = 's32[1]{0}', space=sflag, size = 0x4, scoped, tag = 'scoped memory for tpu_custom_call.1']
    %8 = vsyncpa [#allocation3], 0
    // Predicated region
    $region2: #{tpu_custom_call.1} parent=1 // pred_check
      _
    $region3: #{tpu_custom_call.1} parent=1 // pred_check_branch
      %10 = sbr.rel (0) target = $region5
    $region4: #{tpu_custom_call.1} parent=1 // pred_region
      _
    $region5: #{tpu_custom_call.1} parent=1 // pred_fallthru
      _
    // Predicated region
    $region6: #{tpu_custom_call.1} parent=1 // pred_check
      _
    $region7: #{tpu_custom_call.1} parent=1 // pred_check_branch
      %12 = sbr.rel (0) target = $region9
    $region8: #{tpu_custom_call.1} parent=1 // pred_region
      _
    $region9: #{tpu_custom_call.1} parent=1 // pred_fallthru
      _
    // Predicated region
    $region10: #{tpu_custom_call.1} parent=1 // pred_check
      _
    $region11: #{tpu_custom_call.1} parent=1 // pred_check_branch
      %14 = sbr.rel (0) target = $region13
    $region12: #{tpu_custom_call.1} parent=1 // pred_region
      _
    $region13: #{tpu_custom_call.1} parent=1 // pred_fallthru
      _
    %v15 = vld [vmem:[%s2] sm:$0xff]
    %v16 = vld [vmem:[%s2 + $0x8] sm:$0xff]
    %v17 = vld [vmem:[%s2 + $0x10] sm:$0xff]
    %v18 = vld [vmem:[%s2 + $0x18] sm:$0xff]
    %v19 = vld [vmem:[%s2 + $0x20] sm:$0xff]
    %v20 = vld [vmem:[%s2 + $0x28] sm:$0xff]
    %v21 = vld [vmem:[%s2 + $0x30] sm:$0xff]
    %v22 = vld [vmem:[%s2 + $0x38] sm:$0xff]
    %v23 = vld [vmem:[%s2 + $0x40] sm:$0xff]
    %v24 = vld [vmem:[%s2 + $0x48] sm:$0xff]
    %v25 = vld [vmem:[%s2 + $0x50] sm:$0xff]
    %v26 = vld [vmem:[%s2 + $0x58] sm:$0xff]
    %v27 = vld [vmem:[%s2 + $0x60] sm:$0xff]
    %v28 = vld [vmem:[%s2 + $0x68] sm:$0xff]
    %v29 = vld [vmem:[%s2 + $0x70] sm:$0xff]
    %v30 = vld [vmem:[%s2 + $0x78] sm:$0xff]
    %v31 = vld [vmem:[%s1] sm:$0xff]
    %v32 = vld [vmem:[%s1 + $0x8] sm:$0xff]
    %v33 = vld [vmem:[%s1 + $0x10] sm:$0xff]
    %v34 = vld [vmem:[%s1 + $0x18] sm:$0xff]
    %v35 = vld [vmem:[%s1 + $0x20] sm:$0xff]
    %v36 = vld [vmem:[%s1 + $0x28] sm:$0xff]
    %v37 = vld [vmem:[%s1 + $0x30] sm:$0xff]
    %v38 = vld [vmem:[%s1 + $0x38] sm:$0xff]
    %v39 = vld [vmem:[%s1 + $0x40] sm:$0xff]
    %v40 = vld [vmem:[%s1 + $0x48] sm:$0xff]
    %v41 = vld [vmem:[%s1 + $0x50] sm:$0xff]
    %v42 = vld [vmem:[%s1 + $0x58] sm:$0xff]
    %v43 = vld [vmem:[%s1 + $0x60] sm:$0xff]
    %v44 = vld [vmem:[%s1 + $0x68] sm:$0xff]
    %v45 = vld [vmem:[%s1 + $0x70] sm:$0xff]
    %v46 = vld [vmem:[%s1 + $0x78] sm:$0xff]
    %v47 = vld [vmem:[%s0] sm:$0x1]
    %49 = vset.pattern.permute.xlu0 0
    %50 = vperm.xlu0 %49, %v31
    %v51 = vpop.permute.xlu0 %50
    %54 = vset.pattern.permute.xlu0 0
    %55 = vperm.xlu0 %54, %v32
    %v56 = vpop.permute.xlu0 %55
    %59 = vset.pattern.permute.xlu0 0
    %60 = vperm.xlu0 %59, %v33
    %v61 = vpop.permute.xlu0 %60
    %64 = vset.pattern.permute.xlu0 0
    %65 = vperm.xlu0 %64, %v34
    %v66 = vpop.permute.xlu0 %65
    %69 = vset.pattern.permute.xlu0 0
    %70 = vperm.xlu0 %69, %v35
    %v71 = vpop.permute.xlu0 %70
    %74 = vset.pattern.permute.xlu0 0
    %75 = vperm.xlu0 %74, %v36
    %v76 = vpop.permute.xlu0 %75
    %79 = vset.pattern.permute.xlu0 0
    %80 = vperm.xlu0 %79, %v37
    %v81 = vpop.permute.xlu0 %80
    %84 = vset.pattern.permute.xlu0 0
    %85 = vperm.xlu0 %84, %v38
    %v86 = vpop.permute.xlu0 %85
    %89 = vset.pattern.permute.xlu0 0
    %90 = vperm.xlu0 %89, %v39
    %v91 = vpop.permute.xlu0 %90
    %94 = vset.pattern.permute.xlu0 0
    %95 = vperm.xlu0 %94, %v40
    %v96 = vpop.permute.xlu0 %95
    %99 = vset.pattern.permute.xlu0 0
    %100 = vperm.xlu0 %99, %v41
    %v101 = vpop.permute.xlu0 %100
    %104 = vset.pattern.permute.xlu0 0
    %105 = vperm.xlu0 %104, %v42
    %v106 = vpop.permute.xlu0 %105
    %109 = vset.pattern.permute.xlu0 0
    %110 = vperm.xlu0 %109, %v43
    %v111 = vpop.permute.xlu0 %110
    %114 = vset.pattern.permute.xlu0 0
    %115 = vperm.xlu0 %114, %v44
    %v116 = vpop.permute.xlu0 %115
    %119 = vset.pattern.permute.xlu0 0
    %120 = vperm.xlu0 %119, %v45
    %v121 = vpop.permute.xlu0 %120
    %124 = vset.pattern.permute.xlu0 0
    %125 = vperm.xlu0 %124, %v46
    %v126 = vpop.permute.xlu0 %125
    %v129 = vlaneseq
    %v130 = vshrl.u32 %v129, 7
    %v131 = vsub.s32 0, %v130
    %v132 = vrot.slane %v47, %v131
    %v134 = vmul.f32 %v51, %v132
    %v135 = vmul.f32 %v56, %v132
    %v136 = vmul.f32 %v61, %v132
    %v137 = vmul.f32 %v66, %v132
    %v138 = vmul.f32 %v71, %v132
    %v139 = vmul.f32 %v76, %v132
    %v140 = vmul.f32 %v81, %v132
    %v141 = vmul.f32 %v86, %v132
    %v142 = vmul.f32 %v91, %v132
    %v143 = vmul.f32 %v96, %v132
    %v144 = vmul.f32 %v101, %v132
    %v145 = vmul.f32 %v106, %v132
    %v146 = vmul.f32 %v111, %v132
    %v147 = vmul.f32 %v116, %v132
    %v148 = vmul.f32 %v121, %v132
    %v149 = vmul.f32 %v126, %v132
    %v150 = vmul.f32 %v134, 2.0
    %v151 = vmul.f32 %v135, 2.0
    %v152 = vmul.f32 %v136, 2.0
    %v153 = vmul.f32 %v137, 2.0
    %v154 = vmul.f32 %v138, 2.0
    %v155 = vmul.f32 %v139, 2.0
    %v156 = vmul.f32 %v140, 2.0
    %v157 = vmul.f32 %v141, 2.0
    %v158 = vmul.f32 %v142, 2.0
    %v159 = vmul.f32 %v143, 2.0
    %v160 = vmul.f32 %v144, 2.0
    %v161 = vmul.f32 %v145, 2.0
    %v162 = vmul.f32 %v146, 2.0
    %v163 = vmul.f32 %v147, 2.0
    %v164 = vmul.f32 %v148, 2.0
    %v165 = vmul.f32 %v149, 2.0
    %167 = vset.pattern.permute.xlu0 0
    %168 = vperm.xlu0 %167, %v15
    %v169 = vpop.permute.xlu0 %168
    %172 = vset.pattern.permute.xlu0 0
    %173 = vperm.xlu0 %172, %v16
    %v174 = vpop.permute.xlu0 %173
    %177 = vset.pattern.permute.xlu0 0
    %178 = vperm.xlu0 %177, %v17
    %v179 = vpop.permute.xlu0 %178
    %182 = vset.pattern.permute.xlu0 0
    %183 = vperm.xlu0 %182, %v18
    %v184 = vpop.permute.xlu0 %183
    %187 = vset.pattern.permute.xlu0 0
    %188 = vperm.xlu0 %187, %v19
    %v189 = vpop.permute.xlu0 %188
    %192 = vset.pattern.permute.xlu0 0
    %193 = vperm.xlu0 %192, %v20
    %v194 = vpop.permute.xlu0 %193
    %197 = vset.pattern.permute.xlu0 0
    %198 = vperm.xlu0 %197, %v21
    %v199 = vpop.permute.xlu0 %198
    %202 = vset.pattern.permute.xlu0 0
    %203 = vperm.xlu0 %202, %v22
    %v204 = vpop.permute.xlu0 %203
    %207 = vset.pattern.permute.xlu0 0
    %208 = vperm.xlu0 %207, %v23
    %v209 = vpop.permute.xlu0 %208
    %212 = vset.pattern.permute.xlu0 0
    %213 = vperm.xlu0 %212, %v24
    %v214 = vpop.permute.xlu0 %213
    %217 = vset.pattern.permute.xlu0 0
    %218 = vperm.xlu0 %217, %v25
    %v219 = vpop.permute.xlu0 %218
    %222 = vset.pattern.permute.xlu0 0
    %223 = vperm.xlu0 %222, %v26
    %v224 = vpop.permute.xlu0 %223
    %227 = vset.pattern.permute.xlu0 0
    %228 = vperm.xlu0 %227, %v27
    %v229 = vpop.permute.xlu0 %228
    %232 = vset.pattern.permute.xlu0 0
    %233 = vperm.xlu0 %232, %v28
    %v234 = vpop.permute.xlu0 %233
    %237 = vset.pattern.permute.xlu0 0
    %238 = vperm.xlu0 %237, %v29
    %v239 = vpop.permute.xlu0 %238
    %242 = vset.pattern.permute.xlu0 0
    %243 = vperm.xlu0 %242, %v30
    %v244 = vpop.permute.xlu0 %243
    %v246 = vsub.f32 %v169, %v150
    %v247 = vsub.f32 %v174, %v151
    %v248 = vsub.f32 %v179, %v152
    %v249 = vsub.f32 %v184, %v153
    %v250 = vsub.f32 %v189, %v154
    %v251 = vsub.f32 %v194, %v155
    %v252 = vsub.f32 %v199, %v156
    %v253 = vsub.f32 %v204, %v157
    %v254 = vsub.f32 %v209, %v158
    %v255 = vsub.f32 %v214, %v159
    %v256 = vsub.f32 %v219, %v160
    %v257 = vsub.f32 %v224, %v161
    %v258 = vsub.f32 %v229, %v162
    %v259 = vsub.f32 %v234, %v163
    %v260 = vsub.f32 %v239, %v164
    %v261 = vsub.f32 %v244, %v165
    %v262 = vmin.f32 %v246, %v250
    %v263 = vmin.f32 %v247, %v251
    %v264 = vmin.f32 %v248, %v252
    %v265 = vmin.f32 %v249, %v253
    %v266 = vmin.f32 %v262, %v254
    %v267 = vmin.f32 %v263, %v255
    %v268 = vmin.f32 %v264, %v256
    %v269 = vmin.f32 %v265, %v257
    %v270 = vmin.f32 %v266, %v258
    %v271 = vmin.f32 %v267, %v259
    %v272 = vmin.f32 %v268, %v260
    %v273 = vmin.f32 %v269, %v261
    %v274 = vmin.f32 %v270, %v271
    %v275 = vmin.f32 %v272, %v273
    %v276 = vmin.f32 %v274, %v275
    %v277 = vrot.slane %v276, 4
    %v278 = vmin.f32 %v276, %v277
    %v279 = vrot.slane %v278, 2
    %v280 = vmin.f32 %v278, %v279
    %v281 = vrot.slane %v280, 1
    %v282 = vmin.f32 %v280, %v281
    %v283 = vlaneseq
    %v284 = vshrl.u32 %v283, 7
    %v285 = vadd.s32 %v284, 8
    %v286 = vadd.s32 %v284, 16
    %v287 = vadd.s32 %v284, 24
    %v288 = vadd.s32 %v284, 32
    %v289 = vadd.s32 %v284, 40
    %v290 = vadd.s32 %v284, 48
    %v291 = vadd.s32 %v284, 56
    %v292 = vadd.s32 %v284, 64
    %v293 = vadd.s32 %v284, 72
    %v294 = vadd.s32 %v284, 80
    %v295 = vadd.s32 %v284, 88
    %v296 = vadd.s32 %v284, 96
    %v297 = vadd.s32 %v284, 104
    %v298 = vadd.s32 %v284, 112
    %v299 = vadd.s32 %v284, 120
    %vm300 = vcmp.eq.f32.partialorder %v246, %v282
    %vm301 = vcmp.eq.f32.partialorder %v247, %v282
    %vm302 = vcmp.eq.f32.partialorder %v248, %v282
    %vm303 = vcmp.eq.f32.partialorder %v249, %v282
    %vm304 = vcmp.eq.f32.partialorder %v250, %v282
    %vm305 = vcmp.eq.f32.partialorder %v251, %v282
    %vm306 = vcmp.eq.f32.partialorder %v252, %v282
    %vm307 = vcmp.eq.f32.partialorder %v253, %v282
    %vm308 = vcmp.eq.f32.partialorder %v254, %v282
    %vm309 = vcmp.eq.f32.partialorder %v255, %v282
    %vm310 = vcmp.eq.f32.partialorder %v256, %v282
    %vm311 = vcmp.eq.f32.partialorder %v257, %v282
    %vm312 = vcmp.eq.f32.partialorder %v258, %v282
    %vm313 = vcmp.eq.f32.partialorder %v259, %v282
    %vm314 = vcmp.eq.f32.partialorder %v260, %v282
    %vm315 = vcmp.eq.f32.partialorder %v261, %v282
    %v316 = vsel %vm300, %v284, 128
    %v317 = vsel %vm301, %v285, 128
    %v318 = vsel %vm302, %v286, 128
    %v319 = vsel %vm303, %v287, 128
    %v320 = vsel %vm304, %v288, 128
    %v321 = vsel %vm305, %v289, 128
    %v322 = vsel %vm306, %v290, 128
    %v323 = vsel %vm307, %v291, 128
    %v324 = vsel %vm308, %v292, 128
    %v325 = vsel %vm309, %v293, 128
    %v326 = vsel %vm310, %v294, 128
    %v327 = vsel %vm311, %v295, 128
    %v328 = vsel %vm312, %v296, 128
    %v329 = vsel %vm313, %v297, 128
    %v330 = vsel %vm314, %v298, 128
    %v331 = vsel %vm315, %v299, 128
    %vm332 = vcmp.lt.s32.totalorder %v316, %v320
    %v333 = vsel %vm332, %v316, %v320
    %vm334 = vcmp.lt.s32.totalorder %v317, %v321
    %v335 = vsel %vm334, %v317, %v321
    %vm336 = vcmp.lt.s32.totalorder %v318, %v322
    %v337 = vsel %vm336, %v318, %v322
    %vm338 = vcmp.lt.s32.totalorder %v319, %v323
    %v339 = vsel %vm338, %v319, %v323
    %vm340 = vcmp.lt.s32.totalorder %v333, %v324
    %v341 = vsel %vm340, %v333, %v324
    %vm342 = vcmp.lt.s32.totalorder %v335, %v325
    %v343 = vsel %vm342, %v335, %v325
    %vm344 = vcmp.lt.s32.totalorder %v337, %v326
    %v345 = vsel %vm344, %v337, %v326
    %vm346 = vcmp.lt.s32.totalorder %v339, %v327
    %v347 = vsel %vm346, %v339, %v327
    %vm348 = vcmp.lt.s32.totalorder %v341, %v328
    %v349 = vsel %vm348, %v341, %v328
    %vm350 = vcmp.lt.s32.totalorder %v343, %v329
    %v351 = vsel %vm350, %v343, %v329
    %vm352 = vcmp.lt.s32.totalorder %v345, %v330
    %v353 = vsel %vm352, %v345, %v330
    %vm354 = vcmp.lt.s32.totalorder %v347, %v331
    %v355 = vsel %vm354, %v347, %v331
    %vm356 = vcmp.lt.s32.totalorder %v349, %v351
    %v357 = vsel %vm356, %v349, %v351
    %vm358 = vcmp.lt.s32.totalorder %v353, %v355
    %v359 = vsel %vm358, %v353, %v355
    %vm360 = vcmp.lt.s32.totalorder %v357, %v359
    %v361 = vsel %vm360, %v357, %v359
    %v362 = vrot.slane %v361, 4
    %vm363 = vcmp.lt.s32.totalorder %v361, %v362
    %v364 = vsel %vm363, %v361, %v362
    %v365 = vrot.slane %v364, 2
    %vm366 = vcmp.lt.s32.totalorder %v364, %v365
    %v367 = vsel %vm366, %v364, %v365
    %v368 = vrot.slane %v367, 1
    %vm369 = vcmp.lt.s32.totalorder %v367, %v368
    %v370 = vsel %vm369, %v367, %v368
    %371 = vst [vmem:[#allocation2] sm:$0x1] %v370
    // Predicated region
    $region14: #{tpu_custom_call.1} parent=1 // pred_check
      _
    $region15: #{tpu_custom_call.1} parent=1 // pred_check_branch
      %373 = sbr.rel (0) target = $region17
    $region16: #{tpu_custom_call.1} parent=1 // pred_region
      %s375 = ssub.s32 16, 16
      %376 = vsyncadd [#allocation3], %s375
      %s378 = sshll.u32 [#allocation2], 4
      %s379 = int_to_ptr.vmem [resolvable:$true] %s378
      %381 = dma.vmem_to_hbm [thread:$0]  %s379, 16, %s3, [#allocation3]
    $region17: #{tpu_custom_call.1} parent=1 // pred_fallthru
      _
    // Predicated region
    $region18: #{tpu_custom_call.1} parent=1 // pred_check
      _
    $region19: #{tpu_custom_call.1} parent=1 // pred_check_branch
      %383 = sbr.rel (0) target = $region21
    $region20: #{tpu_custom_call.1} parent=1 // pred_region
      %384 = dma.done [#allocation3], 16
    $region21: #{tpu_custom_call.1} parent=1 // pred_fallthru
      _
    %385 = vsyncpa [#allocation3], 1

</llo_original>
